<compile_context>
chip_gen: v5e
topology: v5e:2x2
jax: 0.10.0
libtpu: 0.0.40
codegen_flags: <defaults>
</compile_context>

<pallas_src>
import math

import jax
import jax.numpy as jnp
from jax.experimental import pallas as pl
from jax.experimental.pallas import tpu as pltpu


def _round_up(x, m):
    return ((x + m - 1) // m) * m


# ---------------------------------------------------------------------------
# Pass 1: support = x_flat @ weight   (tall-M matmul, batch folded into rows)
# ---------------------------------------------------------------------------
def _support_kernel(x_ref, w_ref, s_ref):
    # x_ref: (TR, Fin), w_ref: (Fin, Fout_pad), s_ref: (TR, Fout_pad)
    s_ref[...] = jnp.dot(
        x_ref[...], w_ref[...], preferred_element_type=jnp.float32
    ).astype(s_ref.dtype)


# ---------------------------------------------------------------------------
# Pass 2: out[b] = adj[b] @ support[b] + bias   (tiled, f32 accumulator)
# ---------------------------------------------------------------------------
def _aggregate_kernel(adj_ref, sup_ref, b_ref, o_ref, acc_ref):
    # adj_ref: (TM, TK), sup_ref: (TK, Fout_pad), b_ref: (1, Fout_pad)
    # o_ref:   (TM, Fout_pad), acc_ref: VMEM (TM, Fout_pad) f32
    @pl.when(pl.program_id(2) == 0)
    def _():
        acc_ref[...] = jnp.zeros_like(acc_ref)

    acc_ref[...] += jnp.dot(
        adj_ref[...], sup_ref[...], preferred_element_type=jnp.float32
    )

    @pl.when(pl.program_id(2) == pl.num_programs(2) - 1)
    def _():
        o_ref[...] = (acc_ref[...] + b_ref[...]).astype(o_ref.dtype)


def graph_convolution(x, adj, weight, bias):
    """x: (B, N, Fin), adj: (B, N, N), weight: (Fin, Fout), bias: (Fout,) or None."""
    B, N, Fin = x.shape
    Fout = weight.shape[1]
    out_dtype = x.dtype

    if bias is None:
        bias = jnp.zeros((Fout,), dtype=jnp.float32)  # bias=False folds to +0

    # --- Lane-dense output: pad Fout up to a multiple of 128 (zero columns). ---
    Fout_p = _round_up(Fout, 128)
    w_p = jnp.zeros((Fin, Fout_p), dtype=weight.dtype).at[:, :Fout].set(weight)
    b_p = (
        jnp.zeros((1, Fout_p), dtype=jnp.float32)
        .at[0, :Fout]
        .set(bias.astype(jnp.float32))
    )

    # --- Pad N so the adjacency can be tiled; pick tile sizes. ---
    # Small N: a single full-N tile (still legal block shapes since they equal
    # the full padded dims).  Large N: 256-aligned tiles (good for the 2x256^2
    # MXU on v6e/v7x, and a multiple of 128 for v5e), O(TM*TK) VMEM.
    if N <= 256:
        N_p = _round_up(N, 8)
        TM = TK = N_p
    else:
        N_p = _round_up(N, 256)
        TM = TK = 256

    x_p, adj_p = x, adj
    if N_p != N:
        x_p = jnp.pad(x, ((0, 0), (0, N_p - N), (0, 0)))
        adj_p = jnp.pad(adj, ((0, 0), (0, N_p - N), (0, N_p - N)))

    # =======================================================================
    # Pass 1: support = (B*N_p, Fin) @ (Fin, Fout_p)
    # =======================================================================
    M = B * N_p
    x_flat = x_p.reshape(M, Fin)
    if M % 256 == 0:
        TR = 256
    elif M % 128 == 0:
        TR = 128
    else:
        TR = M  # tiny problem: one grid step, full block

    itemsize = 4  # f32
    support = pl.pallas_call(
        _support_kernel,
        out_shape=jax.ShapeDtypeStruct((M, Fout_p), jnp.float32),
        grid_spec=pltpu.PrefetchScalarGridSpec(
            num_scalar_prefetch=0,
            grid=(M // TR,),
            in_specs=[
                pl.BlockSpec((TR, Fin), lambda r: (r, 0)),
                pl.BlockSpec((Fin, Fout_p), lambda r: (0, 0)),
            ],
            out_specs=pl.BlockSpec((TR, Fout_p), lambda r: (r, 0)),
        ),
        compiler_params=pltpu.CompilerParams(
            dimension_semantics=("parallel",),
        ),
        cost_estimate=pl.CostEstimate(
            flops=2 * M * Fin * Fout_p,
            transcendentals=0,
            bytes_accessed=(M * Fin + Fin * Fout_p + M * Fout_p) * itemsize,
        ),
    )(x_flat, w_p)

    support = support.reshape(B, N_p, Fout_p)

    # =======================================================================
    # Pass 2: out = adj @ support + bias  (grid: batch x row-tile x k-tile)
    # =======================================================================
    grid = (B, N_p // TM, N_p // TK)
    out_p = pl.pallas_call(
        _aggregate_kernel,
        out_shape=jax.ShapeDtypeStruct((B, N_p, Fout_p), out_dtype),
        grid_spec=pltpu.PrefetchScalarGridSpec(
            num_scalar_prefetch=0,
            grid=grid,
            in_specs=[
                pl.BlockSpec((pl.Squeezed(), TM, TK), lambda b, i, k: (b, i, k)),
                pl.BlockSpec((pl.Squeezed(), TK, Fout_p), lambda b, i, k: (b, k, 0)),
                pl.BlockSpec((1, Fout_p), lambda b, i, k: (0, 0)),
            ],
            out_specs=pl.BlockSpec(
                (pl.Squeezed(), TM, Fout_p), lambda b, i, k: (b, i, 0)
            ),
            scratch_shapes=[pltpu.VMEM((TM, Fout_p), jnp.float32)],
        ),
        compiler_params=pltpu.CompilerParams(
            # Two parallel axes so megacore (v7x: 2 TCs) can shard batch and
            # row tiles; the contraction axis carries the accumulator.
            dimension_semantics=("parallel", "parallel", "arbitrary"),
            # Tile footprint is a few MiB; keep the scoped budget well under
            # v7x's 64 MiB physical VMEM.
            vmem_limit_bytes=48 * 1024 * 1024,
        ),
        cost_estimate=pl.CostEstimate(
            flops=2 * B * N_p * N_p * Fout_p,
            transcendentals=0,
            bytes_accessed=(B * N_p * N_p + B * N_p * Fout_p * 2 + Fout_p)
            * itemsize,
        ),
    )(adj_p, support, b_p)

    # Strip node / feature padding.
    return out_p[:, :N, :Fout]


def init_params(key, in_features, out_features, dtype=jnp.float32):
    """Deterministic re-implementation of the module's reset_parameters()."""
    # nn.init.kaiming_uniform_ (a=0, fan_in mode, leaky_relu): for a 2D
    # (Fin, Fout) tensor PyTorch's fan_in is size(1) == out_features, so
    # bound = sqrt(2) * sqrt(3 / out_features) = sqrt(6 / out_features).
    bound = math.sqrt(6.0 / out_features)
    w = jax.random.uniform(
        key, (in_features, out_features), dtype, minval=-bound, maxval=bound
    )
    b = jnp.zeros((out_features,), dtype=dtype)
    return w, b


def _reference(x, adj, weight, bias):
    sup = jnp.einsum("bni,io->bno", x, weight)
    out = jnp.einsum("bnm,bmo->bno", adj, sup)
    return out if bias is None else out + bias


if __name__ == "__main__":
    key = jax.random.PRNGKey(0)

    # Case 1: shapes matching the seizure-detection usage scale (small).
    B, N, Fin, Fout = 2, 16, 32, 32
    kx, kadj, kw, key = jax.random.split(key, 4)
    x = jax.random.normal(kx, (B, N, Fin), dtype=jnp.float32)
    adj = jax.random.uniform(kadj, (B, N, N), dtype=jnp.float32)
    weight, bias = init_params(kw, Fin, Fout)

    out = jax.block_until_ready(graph_convolution(x, adj, weight, bias))
    ref = _reference(x, adj, weight, bias)
    assert out.shape == (B, N, Fout)
    assert jnp.allclose(out, ref, atol=1e-4, rtol=1e-4)

    # Case 2: non-aligned N / Fout to exercise the padding path (and bias=None).
    B2, N2, Fin2, Fout2 = 2, 20, 24, 48
    kx2, kadj2, kw2, _ = jax.random.split(key, 4)
    x2 = jax.random.normal(kx2, (B2, N2, Fin2), dtype=jnp.float32)
    adj2 = jax.random.uniform(kadj2, (B2, N2, N2), dtype=jnp.float32)
    weight2, _ = init_params(kw2, Fin2, Fout2)

    out2 = jax.block_until_ready(graph_convolution(x2, adj2, weight2, None))
    ref2 = _reference(x2, adj2, weight2, None)
    assert out2.shape == (B2, N2, Fout2)
    assert jnp.allclose(out2, ref2, atol=1e-4, rtol=1e-4)

    print("KERNEL_OK")
</pallas_src>

<mosaic_0001>
module attributes {stable_mosaic.version = 11 : i64} {
  func.func @_support_kernel(%arg0: i32, %arg1: memref<32x32xf32, #tpu.memory_space<vmem>>, %arg2: memref<32x128xf32, #tpu.memory_space<vmem>>, %arg3: memref<32x128xf32, #tpu.memory_space<vmem>>) attributes {dimension_semantics = [#tpu.dimension_semantics<parallel>], iteration_bounds = array<i64: 1>, scalar_prefetch = 0 : i64, scratch_operands = 0 : i64, tpu.core_type = #tpu.core_type<tc>, window_params = [{transform_indices = @transform_0, window_bounds = array<i64: 32, 32>}, {pipeline_mode = #tpu.pipeline_mode<synchronous>, transform_indices = @transform_1, window_bounds = array<i64: 32, 128>}, {transform_indices = @transform_2, window_bounds = array<i64: 32, 128>}]} {
    %c0 = arith.constant 0 : index
    %c0_0 = arith.constant 0 : index
    %0 = vector.load %arg1[%c0, %c0_0] : memref<32x32xf32, #tpu.memory_space<vmem>>, vector<32x32xf32>
    %c0_1 = arith.constant 0 : index
    %c0_2 = arith.constant 0 : index
    %1 = vector.load %arg2[%c0_1, %c0_2] : memref<32x128xf32, #tpu.memory_space<vmem>>, vector<32x128xf32>
    %cst = arith.constant dense<0.000000e+00> : vector<32x128xf32>
    %2 = tpu.matmul %0, %1, %cst {dimension_numbers = #tpu.dot_dimension_numbers<[1], [0], [0], [1], [0, 0, 1, 1], [], []>} : vector<32x32xf32>, vector<32x128xf32>, vector<32x128xf32> -> vector<32x128xf32>
    %c0_3 = arith.constant 0 : index
    %c0_4 = arith.constant 0 : index
    %3 = vector.load %arg3[%c0_3, %c0_4] : memref<32x128xf32, #tpu.memory_space<vmem>>, vector<32x128xf32>
    tpu.vector_store %arg3[%c0_3, %c0_4], %2 {strides = array<i32>} : memref<32x128xf32, #tpu.memory_space<vmem>>, vector<32x128xf32>,
    return
  }
  func.func @transform_0(%arg0: i32) -> (i32, i32) {
    %c0_i32 = arith.constant 0 : i32
    %c0_i32_0 = arith.constant 0 : i32
    return %arg0, %c0_i32 : i32, i32
  }
  func.func @transform_1(%arg0: i32) -> (i32, i32) {
    %c0_i32 = arith.constant 0 : i32
    %c0_i32_0 = arith.constant 0 : i32
    %c0_i32_1 = arith.constant 0 : i32
    return %c0_i32, %c0_i32_0 : i32, i32
  }
  func.func @transform_2(%arg0: i32) -> (i32, i32) {
    %c0_i32 = arith.constant 0 : i32
    %c0_i32_0 = arith.constant 0 : i32
    return %arg0, %c0_i32 : i32, i32
  }
}

</mosaic_0001>

<llo_original>
// kernel: tpu_custom_call.1
$region0: #{tpu_custom_call.1}
  #allocation0 [shape = 'u32[]', space=smem, size = 0x4, offset = 0x4, fixed_abs, tag = 'smem constant byte address 0x4 - core index']
  #allocation1 [shape = 'u32[72,128]{1,0:T(1,128)}', space=vmem, size = 0x9000, scoped, tag = 'internal scratch']
  %s0 = inlined_call_operand.hbm [shape: f32[32,32], index: 0, kind: input, shape index: {}]
  %s1 = inlined_call_operand.hbm [shape: f32[32,128], index: 1, kind: input, shape index: {}]
  %s2 = inlined_call_operand.hbm [shape: f32[32,128], index: 2, kind: output, shape index: {}]
  %s3 = sld [smem:[#allocation0]]
  $region26: #{tpu_custom_call.1} parent=0
    _
  %s5 = ssub.s32 1, %s3
  %s6 = scalar_select 0, %s5, %s3
  $region1: #{tpu_custom_call.1} parent=0
    #allocation2 [shape = 'u8[16384]{0}', space=vmem, size = 0x4000, scoped, tag = 'input window, operand 0, single buffered']
    #allocation3 [shape = 's32[1]{0}', space=sflag, size = 0x4, scoped, tag = 'scoped memory for tpu_custom_call.1']
    #allocation4 [shape = 's32[1]{0}', space=sflag, size = 0x4, scoped, tag = 'scoped memory for tpu_custom_call.1']
    #allocation5 [shape = 'u8[16384]{0}', space=vmem, size = 0x4000, scoped, tag = 'input window, operand 1, single buffered']
    #allocation6 [shape = 's32[1]{0}', space=sflag, size = 0x4, scoped, tag = 'scoped memory for tpu_custom_call.1']
    #allocation7 [shape = 'u8[16384]{0}', space=vmem, size = 0x4000, scoped, tag = 'output window, operand 0, single buffered']
    %7 = vsyncpa [#allocation3], 0
    %8 = vsyncpa [#allocation6], 0
    %9 = vsyncpa [#allocation4], 0
    // Predicated region
    $region2: #{tpu_custom_call.1} parent=1 // pred_check
      _
    $region3: #{tpu_custom_call.1} parent=1 // pred_check_branch
      %11 = sbr.rel (0) target = $region5
    $region4: #{tpu_custom_call.1} parent=1 // pred_region
      %13 = vsyncadd [#allocation3], 0
      %s14 = sshll.u32 %s0, 4
      %s15 = int_to_ptr.hbm [resolvable:$true] %s14
      %s16 = sshll.u32 [#allocation2], 4
      %s17 = int_to_ptr.vmem [resolvable:$true] %s16
      %22 = dma.hbm_to_vmem [thread:$0]  %s15, 512, %s17, [#allocation3], 128, 128, 8
    $region5: #{tpu_custom_call.1} parent=1 // pred_fallthru
      _
    // Predicated region
    $region6: #{tpu_custom_call.1} parent=1 // pred_check
      _
    $region7: #{tpu_custom_call.1} parent=1 // pred_check_branch
      %24 = sbr.rel (0) target = $region9
    $region8: #{tpu_custom_call.1} parent=1 // pred_region
      %26 = vsyncadd [#allocation6], 0
      %s27 = sshll.u32 %s1, 4
      %s28 = int_to_ptr.hbm [resolvable:$true] %s27
      %s29 = sshll.u32 [#allocation5], 4
      %s30 = int_to_ptr.vmem [resolvable:$true] %s29
      %35 = dma.hbm_to_vmem [thread:$0]  %s28, 512, %s30, [#allocation6], 128, 128, 8
    $region9: #{tpu_custom_call.1} parent=1 // pred_fallthru
      _
    // Predicated region
    $region10: #{tpu_custom_call.1} parent=1 // pred_check
      _
    $region11: #{tpu_custom_call.1} parent=1 // pred_check_branch
      %37 = sbr.rel (0) target = $region13
    $region12: #{tpu_custom_call.1} parent=1 // pred_region
      %39 = dma.done [#allocation3], 512
    $region13: #{tpu_custom_call.1} parent=1 // pred_fallthru
      _
    // Predicated region
    $region14: #{tpu_custom_call.1} parent=1 // pred_check
      _
    $region15: #{tpu_custom_call.1} parent=1 // pred_check_branch
      %41 = sbr.rel (0) target = $region17
    $region16: #{tpu_custom_call.1} parent=1 // pred_region
      %43 = dma.done [#allocation6], 512
    $region17: #{tpu_custom_call.1} parent=1 // pred_fallthru
      _
    %v44 = vld [vmem:[#allocation2] sm:$0xff]
    %v45 = vld [vmem:[#allocation2 + $0x8] sm:$0xff]
    %v46 = vld [vmem:[#allocation2 + $0x10] sm:$0xff]
    %v47 = vld [vmem:[#allocation2 + $0x18] sm:$0xff]
    %v48 = vld [vmem:[#allocation5] sm:$0xff]
    %v49 = vld [vmem:[#allocation5 + $0x8] sm:$0xff]
    %v50 = vld [vmem:[#allocation5 + $0x10] sm:$0xff]
    %v51 = vld [vmem:[#allocation5 + $0x18] sm:$0xff]
    %vm52 = vcmask 261120
    %v54 = vsel %vm52, %v44, 0
    %v57 = vsel %vm52, %v45, 0
    %v60 = vsel %vm52, %v46, 0
    %v63 = vsel %vm52, %v47, 0
    %65 = vmatpush.msra.mxu0 0.0
    %66 = vmatpush.msra.mxu0 0.0
    %67 = vmatpush.msra.mxu0 0.0
    %68 = vmatpush.msra.mxu0 0.0
    %69 = vmatpush.msra.mxu0 0.0
    %70 = vmatpush.msra.mxu0 0.0
    %71 = vmatpush.msra.mxu0 0.0
    %72 = vmatpush.msra.mxu0 0.0
    %73 = vmatpush.msra.mxu0 0.0
    %74 = vmatpush.msra.mxu0 0.0
    %75 = vmatpush.msra.mxu0 0.0
    %76 = vmatpush.msra.mxu0 0.0
    %77 = vmatpush.msra.mxu0 %v51
    %78 = vmatpush.msra.mxu0 %v50
    %79 = vmatpush.msra.mxu0 %v49
    %80 = vmatpush.msra.mxu0 %v48
    %81 = vmatmul.f32.gmra.mxu0 %v54
    %v82 = vpop.f32.mrf.mxu0
    %v83 = vadd.f32 0.0, %v82
    %84 = vmatmul.f32.gmra.mxu0 %v57
    %v85 = vpop.f32.mrf.mxu0
    %v86 = vadd.f32 0.0, %v85
    %87 = vmatmul.f32.gmra.mxu0 %v60
    %v88 = vpop.f32.mrf.mxu0
    %v89 = vadd.f32 0.0, %v88
    %90 = vmatmul.f32.gmra.mxu0 %v63
    %v91 = vpop.f32.mrf.mxu0
    %v92 = vadd.f32 0.0, %v91
    %93 = vdwg.mxu0
    %94 = vst [vmem:[#allocation7] sm:$0xff] %v83
    %95 = vst [vmem:[#allocation7 + $0x8] sm:$0xff] %v86
    %96 = vst [vmem:[#allocation7 + $0x10] sm:$0xff] %v89
    %97 = vst [vmem:[#allocation7 + $0x18] sm:$0xff] %v92
    // Predicated region
    $region18: #{tpu_custom_call.1} parent=1 // pred_check
      _
    $region19: #{tpu_custom_call.1} parent=1 // pred_check_branch
      %99 = sbr.rel (0) target = $region21
    $region20: #{tpu_custom_call.1} parent=1 // pred_region
      %101 = vsyncadd [#allocation4], 0
      %s102 = sshll.u32 [#allocation7], 4
      %s103 = int_to_ptr.vmem [resolvable:$true] %s102
      %s104 = sshll.u32 %s2, 4
      %s105 = int_to_ptr.hbm [resolvable:$true] %s104
      %110 = dma.vmem_to_hbm [thread:$0]  %s103, 512, %s105, [#allocation4], 128, 128, 8
    $region21: #{tpu_custom_call.1} parent=1 // pred_fallthru
      _
    // Predicated region
    $region22: #{tpu_custom_call.1} parent=1 // pred_check
      _
    $region23: #{tpu_custom_call.1} parent=1 // pred_check_branch
      %112 = sbr.rel (0) target = $region25
    $region24: #{tpu_custom_call.1} parent=1 // pred_region
      %114 = dma.done [#allocation4], 512
    $region25: #{tpu_custom_call.1} parent=1 // pred_fallthru
      _
    %115 = vsyncpa [#allocation3], 1
    %116 = vsyncpa [#allocation6], 1
    %117 = vsyncpa [#allocation4], 1

</llo_original>
